<compile_context>
chip_gen: v6e
topology: v6e:2x2x1
jax: 0.10.0
libtpu: 0.0.40
codegen_flags: <defaults>
</compile_context>

<pallas_src>
import jax
import jax.numpy as jnp
from jax import lax
from jax.experimental import pallas as pl
from jax.experimental.pallas import tpu as pltpu


POOL_K, POOL_S, POOL_PAD = 4, 4, 59


# ---------------------------------------------------------------------------
# Fused kernel: conv-as-matmul (+ folded bias) + sigmoid + avg-pool-as-matmul
# ---------------------------------------------------------------------------
def fused_kernel(p_ref, w_ref, q_ref, o_ref):
    # p_ref: (K, Mn)       im2col patches of one batch item (+ ones row), f32
    # w_ref: (Cout, K)     conv weights with bias folded as last column, f32
    # q_ref: (Mn, PPp)     reduced + lane-padded kron(P, P) pooling matrix, bf16
    # o_ref: (1, Cout, PPp) pooled output block, f32
    acc = jnp.dot(w_ref[...], p_ref[...],
                  preferred_element_type=jnp.float32)            # (Cout, Mn)
    y = pl.reciprocal(1.0 + jnp.exp(-acc), approx=True)          # sigmoid (EUP)
    o_ref[0] = jnp.dot(y.astype(q_ref.dtype), q_ref[...],
                       preferred_element_type=jnp.float32)       # (Cout, PPp)


def fused_conv_sigmoid_pool(patches_aug, w_aug, q_pool, *, n_batch):
    # patches_aug: (K, N*Mn), w_aug: (Cout, K), q_pool: (Mn, PPp) bf16
    K, NM = patches_aug.shape
    Cout = w_aug.shape[0]
    Mn, PPp = q_pool.shape
    assert NM == n_batch * Mn, "patch column count mismatch"

    flops = n_batch * (2 * Cout * K * Mn + 2 * Cout * Mn * PPp)
    bytes_accessed = (patches_aug.size * 4 + w_aug.size * 4
                      + q_pool.size * 2 + n_batch * Cout * PPp * 4)

    return pl.pallas_call(
        fused_kernel,
        out_shape=jax.ShapeDtypeStruct((n_batch, Cout, PPp), jnp.float32),
        grid=(n_batch,),
        in_specs=[
            pl.BlockSpec((K, Mn), lambda n: (0, n)),      # patches of item n
            pl.BlockSpec((Cout, K), lambda n: (0, 0)),    # all channels at once
            pl.BlockSpec((Mn, PPp), lambda n: (0, 0)),    # shared pool matrix
        ],
        out_specs=pl.BlockSpec((1, Cout, PPp), lambda n: (n, 0, 0)),
        compiler_params=pltpu.CompilerParams(
            dimension_semantics=("arbitrary",)),
        cost_estimate=pl.CostEstimate(
            flops=flops,
            transcendentals=n_batch * Cout * Mn,
            bytes_accessed=bytes_accessed),
    )(patches_aug, w_aug, q_pool)


# ---------------------------------------------------------------------------
# Host-side glue: im2col (channel-major) and pooling matrix construction
# ---------------------------------------------------------------------------
def im2col_cm(x_nchw, *, k=3, stride=2, pad=1):
    # Returns patches of shape (Cin*k*k, N*Ho*Wo):
    #   row index = cin*k*k + kh*k + kw   (matches conv_w.reshape(Cout, -1))
    #   col index = n*Ho*Wo + h*Wo + w    (NCHW spatial flatten)
    N, C, H, W = x_nchw.shape
    Ho = (H + 2 * pad - k) // stride + 1
    Wo = (W + 2 * pad - k) // stride + 1
    xp = jnp.pad(x_nchw, ((0, 0), (0, 0), (pad, pad), (pad, pad)))
    rows = []
    for c in range(C):
        for kh in range(k):
            for kw in range(k):
                rows.append(
                    xp[:, c,
                       kh:kh + stride * Ho:stride,
                       kw:kw + stride * Wo:stride].reshape(N * Ho * Wo))
    return jnp.stack(rows, axis=0), Ho, Wo


def pool_out_size(in_size, kernel, stride, pad):
    return (in_size + 2 * pad - kernel) // stride + 1


def pool_nonzero_range(in_size, kernel, stride, pad):
    # Pooled indices whose window overlaps real (un-padded) data.
    out_size = pool_out_size(in_size, kernel, stride, pad)
    cols = [j for j in range(out_size)
            if (j * stride - pad) < in_size and (j * stride - pad + kernel) > 0]
    return cols[0], cols[-1] + 1


def build_pool_matrix(in_size, kernel, stride, pad):
    # P[i, j] = 1/kernel if un-padded input row i falls in pooled window j.
    out_size = pool_out_size(in_size, kernel, stride, pad)
    i = jnp.arange(in_size)[:, None]
    j = jnp.arange(out_size)[None, :]
    lo = j * stride - pad
    mask = (i >= lo) & (i < lo + kernel)
    # count_include_pad=True -> divisor = kernel per axis -> 1/k^2 total.
    return jnp.where(mask, 1.0 / kernel, 0.0).astype(jnp.float32)


def build_reduced_pool_matrix(in_size):
    # Q' = kron(P[:, lo:hi], P[:, lo:hi]) padded to a 128-lane multiple, bf16.
    lo, hi = pool_nonzero_range(in_size, POOL_K, POOL_S, POOL_PAD)
    p_red = build_pool_matrix(in_size, POOL_K, POOL_S, POOL_PAD)[:, lo:hi]
    q_red = jnp.kron(p_red, p_red)                      # (in_size^2, (hi-lo)^2)
    npz2 = q_red.shape[1]
    ppp = max(128, ((npz2 + 127) // 128) * 128)
    return jnp.pad(q_red, ((0, 0), (0, ppp - npz2))).astype(jnp.bfloat16)


@jax.jit
def model_forward(x_nchw, conv_w, conv_b, q_pool):
    N, Cin, H, W = x_nchw.shape
    Cout = conv_w.shape[0]

    patches, Ho, Wo = im2col_cm(x_nchw)                  # (Cin*9, N*Ho*Wo)
    ones = jnp.ones((1, patches.shape[1]), patches.dtype)
    patches_aug = jnp.concatenate([patches, ones], axis=0)          # (28, N*Mn)
    w_aug = jnp.concatenate([conv_w.reshape(Cout, Cin * 9),
                             conv_b.reshape(Cout, 1)], axis=1)      # (Cout, 28)

    Po = pool_out_size(Ho, POOL_K, POOL_S, POOL_PAD)
    lo, hi = pool_nonzero_range(Ho, POOL_K, POOL_S, POOL_PAD)
    npz = hi - lo

    out = fused_conv_sigmoid_pool(patches_aug, w_aug, q_pool, n_batch=N)
    out = out[:, :, :npz * npz].reshape(N, Cout, npz, npz)
    # Windows outside [lo, hi) lie entirely in zero padding -> exactly zero.
    return jnp.pad(out, ((0, 0), (0, 0), (lo, Po - hi), (lo, Po - hi)))


def reference_forward(x_nchw, conv_w, conv_b):
    y = lax.conv_general_dilated(
        x_nchw, conv_w, window_strides=(2, 2), padding=((1, 1), (1, 1)),
        dimension_numbers=("NCHW", "OIHW", "NCHW"))
    y = y + conv_b.reshape(1, -1, 1, 1)
    y = jax.nn.sigmoid(y)
    s = lax.reduce_window(
        y, 0.0, lax.add, window_dimensions=(1, 1, POOL_K, POOL_K),
        window_strides=(1, 1, POOL_S, POOL_S),
        padding=((0, 0), (0, 0), (POOL_PAD, POOL_PAD), (POOL_PAD, POOL_PAD)))
    return s / float(POOL_K * POOL_K)


if __name__ == "__main__":
    key = jax.random.PRNGKey(0)
    kx, kw, kb = jax.random.split(key, 3)

    # shapes implied by the module: x = randn(1, 3, 64, 64)
    x = jax.random.normal(kx, (1, 3, 64, 64), dtype=jnp.float32)
    conv_w = (jax.random.normal(kw, (16, 3, 3, 3), dtype=jnp.float32)
              * (1.0 / jnp.sqrt(27.0)))
    conv_b = jax.random.normal(kb, (16,), dtype=jnp.float32) * 0.1

    Ho = (64 + 2 * 1 - 3) // 2 + 1                       # 32
    Q = build_reduced_pool_matrix(Ho)                    # (1024, 128) bf16

    out = jax.block_until_ready(model_forward(x, conv_w, conv_b, Q))
    ref = jax.block_until_ready(reference_forward(x, conv_w, conv_b))

    assert out.shape == ref.shape == (1, 16, 37, 37), out.shape
    assert jnp.allclose(out, ref, atol=1e-2, rtol=1e-2), (
        float(jnp.max(jnp.abs(out - ref))))

    print("KERNEL_OK")
</pallas_src>

<mosaic_0001>
module attributes {stable_mosaic.version = 11 : i64} {
  func.func @fused_kernel(%arg0: i32, %arg1: memref<28x1024xf32, #tpu.memory_space<vmem>>, %arg2: memref<16x28xf32, #tpu.memory_space<vmem>>, %arg3: memref<1024x128xbf16, #tpu.memory_space<vmem>>, %arg4: memref<1x16x128xf32, #tpu.memory_space<vmem>>) attributes {dimension_semantics = [#tpu.dimension_semantics<arbitrary>], iteration_bounds = array<i64: 1>, scalar_prefetch = 0 : i64, scratch_operands = 0 : i64, tpu.core_type = #tpu.core_type<tc>, window_params = [{transform_indices = @transform_0, window_bounds = array<i64: 28, 1024>}, {pipeline_mode = #tpu.pipeline_mode<synchronous>, transform_indices = @transform_1, window_bounds = array<i64: 16, 28>}, {pipeline_mode = #tpu.pipeline_mode<synchronous>, transform_indices = @transform_2, window_bounds = array<i64: 1024, 128>}, {transform_indices = @transform_3, window_bounds = array<i64: 1, 16, 128>}]} {
    %c0 = arith.constant 0 : index
    %c0_0 = arith.constant 0 : index
    %0 = vector.load %arg2[%c0, %c0_0] : memref<16x28xf32, #tpu.memory_space<vmem>>, vector<16x28xf32>
    %c0_1 = arith.constant 0 : index
    %c0_2 = arith.constant 0 : index
    %1 = vector.load %arg1[%c0_1, %c0_2] : memref<28x1024xf32, #tpu.memory_space<vmem>>, vector<28x1024xf32>
    %cst = arith.constant dense<0.000000e+00> : vector<16x1024xf32>
    %2 = tpu.matmul %0, %1, %cst {dimension_numbers = #tpu.dot_dimension_numbers<[1], [0], [0], [1], [0, 0, 1, 1], [], []>} : vector<16x28xf32>, vector<28x1024xf32>, vector<16x1024xf32> -> vector<16x1024xf32>
    %cst_3 = arith.constant 0.000000e+00 : f32
    %3 = vector.broadcast %cst_3 : f32 to vector<16x1024xf32>
    %4 = arith.subf %3, %2 : vector<16x1024xf32>
    %5 = math.exp %4 : vector<16x1024xf32>
    %cst_4 = arith.constant 1.000000e+00 : f32
    %6 = vector.broadcast %cst_4 : f32 to vector<16x1024xf32>
    %7 = arith.addf %6, %5 : vector<16x1024xf32>
    %8 = tpu.reciprocal %7 {approx = true} : vector<16x1024xf32> -> vector<16x1024xf32>
    %9 = arith.truncf %8 : vector<16x1024xf32> to vector<16x1024xbf16>
    %c0_5 = arith.constant 0 : index
    %c0_6 = arith.constant 0 : index
    %10 = vector.load %arg3[%c0_5, %c0_6] : memref<1024x128xbf16, #tpu.memory_space<vmem>>, vector<1024x128xbf16>
    %cst_7 = arith.constant dense<0.000000e+00> : vector<16x128xf32>
    %11 = tpu.matmul %9, %10, %cst_7 {dimension_numbers = #tpu.dot_dimension_numbers<[1], [0], [0], [1], [0, 0, 1, 1], [], []>} : vector<16x1024xbf16>, vector<1024x128xbf16>, vector<16x128xf32> -> vector<16x128xf32>
    %c0_8 = arith.constant 0 : index
    %c0_9 = arith.constant 0 : index
    %c0_10 = arith.constant 0 : index
    %12 = vector.load %arg4[%c0_8, %c0_9, %c0_10] : memref<1x16x128xf32, #tpu.memory_space<vmem>>, vector<1x16x128xf32>
    %13 = vector.shape_cast %12 : vector<1x16x128xf32> to vector<16x128xf32>
    %14 = vector.shape_cast %11 : vector<16x128xf32> to vector<1x16x128xf32>
    tpu.vector_store %arg4[%c0_8, %c0_9, %c0_10], %14 {strides = array<i32>} : memref<1x16x128xf32, #tpu.memory_space<vmem>>, vector<1x16x128xf32>,
    return
  }
  func.func @transform_0(%arg0: i32) -> (i32, i32) {
    %c0_i32 = arith.constant 0 : i32
    %c0_i32_0 = arith.constant 0 : i32
    return %c0_i32, %arg0 : i32, i32
  }
  func.func @transform_1(%arg0: i32) -> (i32, i32) {
    %c0_i32 = arith.constant 0 : i32
    %c0_i32_0 = arith.constant 0 : i32
    %c0_i32_1 = arith.constant 0 : i32
    return %c0_i32, %c0_i32_0 : i32, i32
  }
  func.func @transform_2(%arg0: i32) -> (i32, i32) {
    %c0_i32 = arith.constant 0 : i32
    %c0_i32_0 = arith.constant 0 : i32
    %c0_i32_1 = arith.constant 0 : i32
    return %c0_i32, %c0_i32_0 : i32, i32
  }
  func.func @transform_3(%arg0: i32) -> (i32, i32, i32) {
    %c0_i32 = arith.constant 0 : i32
    %c0_i32_0 = arith.constant 0 : i32
    %c0_i32_1 = arith.constant 0 : i32
    return %arg0, %c0_i32, %c0_i32_0 : i32, i32, i32
  }
}

</mosaic_0001>

<llo_original>
// kernel: squeeze.53
$region0: #{squeeze.53}
  %s0 = inlined_call_operand.vmem [shape: f32[1,1,32,32], index: 0, kind: input, shape index: {}]
  %s1 = inlined_call_operand.vmem [shape: f32[1,1024], index: 1, kind: output, shape index: {}]
  $region1: #{squeeze.53} parent=0
    #allocation0 [shape = 'u8[32768]{0}', space=vmem, size = 0x8000, scoped, tag = 'scoped mem for output reshape']
    %v2 = vld [vmem:[%s0] ss:$4 sm:$0xff]
    %vm3 = vcmask 261120
    %4 = vst.msk [vmem:[#allocation0] ss:$8 sm:$0xf] %vm3, %v2
    %5 = vst.msk [vmem:[#allocation0] ss:$8 sm:$0xf0] %vm3, %v2
    %s6 = scalar_lea.vmem %s0, 3
    %v7 = vld [vmem:[%s6] ss:$4 sm:$0xff]
    %8 = vrot.lane.b32.xlu0 %v7, 96
    %v9 = vpop.permute.xlu0 %8
    %vm10 = vcmask 1048320
    %11 = vst.msk [vmem:[#allocation0] ss:$8 sm:$0xf] %vm10, %v9
    %12 = vst.msk [vmem:[#allocation0] ss:$8 sm:$0xf0] %vm10, %v9
    %s13 = scalar_lea.vmem %s0, 2
    %v14 = vld [vmem:[%s13] ss:$4 sm:$0xff]
    %15 = vrot.lane.b32.xlu0 %v14, 64
    %v16 = vpop.permute.xlu0 %15
    %vm17 = vcmask 785920
    %18 = vst.msk [vmem:[#allocation0] ss:$8 sm:$0xf] %vm17, %v16
    %19 = vst.msk [vmem:[#allocation0] ss:$8 sm:$0xf0] %vm17, %v16
    %s20 = scalar_lea.vmem %s0, 1
    %v21 = vld [vmem:[%s20] ss:$4 sm:$0xff]
    %22 = vrot.lane.b32.xlu0 %v21, 32
    %v23 = vpop.permute.xlu0 %22
    %vm24 = vcmask 523520
    %25 = vst.msk [vmem:[#allocation0] ss:$8 sm:$0xf] %vm24, %v23
    %26 = vst.msk [vmem:[#allocation0] ss:$8 sm:$0xf0] %vm24, %v23
    %s28 = sshll.u32 1, 1
    %s29 = ssub.s32 %s28, 1
    %v31 = vld [vmem:[#allocation0] sm:%s29]
    %s32 = sshll.u32 1, 1
    %s33 = ssub.s32 %s32, 1
    %34 = vst [vmem:[%s1] sm:%s33] %v31
    %s35 = scalar_lea.vmem [#allocation0], 8
    %v36 = vld [vmem:[%s35] sm:%s29]
    %s37 = sshll.u32 1, 1
    %s38 = ssub.s32 %s37, 1
    %s39 = scalar_lea.vmem %s1, 1
    %40 = vst [vmem:[%s39] sm:%s38] %v36
    %s41 = scalar_lea.vmem [#allocation0], 16
    %v42 = vld [vmem:[%s41] sm:%s29]
    %s43 = sshll.u32 1, 1
    %s44 = ssub.s32 %s43, 1
    %s45 = smul.addr 1, 2
    %s46 = scalar_lea.vmem %s1, %s45
    %47 = vst [vmem:[%s46] sm:%s44] %v42
    %s48 = scalar_lea.vmem [#allocation0], 24
    %v49 = vld [vmem:[%s48] sm:%s29]
    %s50 = sshll.u32 1, 1
    %s51 = ssub.s32 %s50, 1
    %s52 = smul.addr 1, 3
    %s53 = scalar_lea.vmem %s1, %s52
    %54 = vst [vmem:[%s53] sm:%s51] %v49
    %s55 = scalar_lea.vmem [#allocation0], 32
    %v56 = vld [vmem:[%s55] sm:%s29]
    %s57 = sshll.u32 1, 1
    %s58 = ssub.s32 %s57, 1
    %s59 = smul.addr 1, 4
    %s60 = scalar_lea.vmem %s1, %s59
    %61 = vst [vmem:[%s60] sm:%s58] %v56
    %s62 = scalar_lea.vmem [#allocation0], 40
    %v63 = vld [vmem:[%s62] sm:%s29]
    %s64 = sshll.u32 1, 1
    %s65 = ssub.s32 %s64, 1
    %s66 = smul.addr 1, 5
    %s67 = scalar_lea.vmem %s1, %s66
    %68 = vst [vmem:[%s67] sm:%s65] %v63
    %s69 = scalar_lea.vmem [#allocation0], 48
    %v70 = vld [vmem:[%s69] sm:%s29]
    %s71 = sshll.u32 1, 1
    %s72 = ssub.s32 %s71, 1
    %s73 = smul.addr 1, 6
    %s74 = scalar_lea.vmem %s1, %s73
    %75 = vst [vmem:[%s74] sm:%s72] %v70
    %s76 = scalar_lea.vmem [#allocation0], 56
    %v77 = vld [vmem:[%s76] sm:%s29]
    %s78 = sshll.u32 1, 1
    %s79 = ssub.s32 %s78, 1
    %s80 = smul.addr 1, 7
    %s81 = scalar_lea.vmem %s1, %s80
    %82 = vst [vmem:[%s81] sm:%s79] %v77

// kernel: model_forward.1
$region0: #{model_forward.1}
  #allocation0 [shape = 'u32[]', space=smem, size = 0x4, offset = 0x4, fixed_abs, tag = 'smem constant byte address 0x4 - core index']
  #allocation1 [shape = 'u32[144,128]{1,0:T(1,128)}', space=vmem, size = 0x12000, scoped, tag = 'internal scratch']
  %s0 = inlined_call_operand.vmem [shape: f32[28,1024], index: 0, kind: input, shape index: {}]
  %s1 = inlined_call_operand.vmem [shape: f32[16,28], index: 1, kind: input, shape index: {}]
  %s2 = inlined_call_operand.vmem [shape: bf16[1024,128], index: 2, kind: input, shape index: {}]
  %s3 = inlined_call_operand.vmem [shape: f32[1,16,128], index: 3, kind: output, shape index: {}]
  %s4 = sld [smem:[#allocation0]]
  $region22: #{model_forward.1} parent=0
    _
  %s6 = ssub.s32 1, %s4
  %s7 = scalar_select 0, %s6, %s4
  // Predicated region
  $region2: #{model_forward.1} parent=0 // pred_check
    _
  $region3: #{model_forward.1} parent=0 // pred_check_branch
    %9 = sbr.rel (0) target = $region5
  $region4: #{model_forward.1} parent=0 // pred_region
    _
  $region5: #{model_forward.1} parent=0 // pred_fallthru
    _
  // Predicated region
  $region6: #{model_forward.1} parent=0 // pred_check
    _
  $region7: #{model_forward.1} parent=0 // pred_check_branch
    %11 = sbr.rel (0) target = $region9
  $region8: #{model_forward.1} parent=0 // pred_region
    _
  $region9: #{model_forward.1} parent=0 // pred_fallthru
    _
  // Predicated region
  $region10: #{model_forward.1} parent=0 // pred_check
    _
  $region11: #{model_forward.1} parent=0 // pred_check_branch
    %13 = sbr.rel (0) target = $region13
  $region12: #{model_forward.1} parent=0 // pred_region
    _
  $region13: #{model_forward.1} parent=0 // pred_fallthru
    _
  %v15 = vld [vmem:[%s1] sm:$0xff]
  %v16 = vld [vmem:[%s1 + $0x8] sm:$0xff]
  %v17 = vld [vmem:[%s0] sm:$0xff]
  %v18 = vld [vmem:[%s0 + $0x8] sm:$0xff]
  %v19 = vld [vmem:[%s0 + $0x10] sm:$0xff]
  %v20 = vld [vmem:[%s0 + $0x18] sm:$0xff]
  %v21 = vld [vmem:[%s0 + $0x20] sm:$0xff]
  %v22 = vld [vmem:[%s0 + $0x28] sm:$0xff]
  %v23 = vld [vmem:[%s0 + $0x30] sm:$0xff]
  %v24 = vld [vmem:[%s0 + $0x38] sm:$0xff]
  %v25 = vld [vmem:[%s0 + $0x40] sm:$0xff]
  %v26 = vld [vmem:[%s0 + $0x48] sm:$0xff]
  %v27 = vld [vmem:[%s0 + $0x50] sm:$0xff]
  %v28 = vld [vmem:[%s0 + $0x58] sm:$0xff]
  %v29 = vld [vmem:[%s0 + $0x60] sm:$0xff]
  %v30 = vld [vmem:[%s0 + $0x68] sm:$0xff]
  %v31 = vld [vmem:[%s0 + $0x70] sm:$0xff]
  %v32 = vld [vmem:[%s0 + $0x78] sm:$0xff]
  %v33 = vld [vmem:[%s0 + $0x80] sm:$0xff]
  %v34 = vld [vmem:[%s0 + $0x88] sm:$0xff]
  %v35 = vld [vmem:[%s0 + $0x90] sm:$0xff]
  %v36 = vld [vmem:[%s0 + $0x98] sm:$0xff]
  %v37 = vld [vmem:[%s0 + $0xa0] sm:$0xff]
  %v38 = vld [vmem:[%s0 + $0xa8] sm:$0xff]
  %v39 = vld [vmem:[%s0 + $0xb0] sm:$0xff]
  %v40 = vld [vmem:[%s0 + $0xb8] sm:$0xff]
  %v41 = vld [vmem:[%s0 + $0xc0] sm:$0xf]
  %v42 = vld [vmem:[%s0 + $0xc8] sm:$0xf]
  %v43 = vld [vmem:[%s0 + $0xd0] sm:$0xf]
  %v44 = vld [vmem:[%s0 + $0xd8] sm:$0xf]
  %v45 = vld [vmem:[%s0 + $0xe0] sm:$0xf]
  %v46 = vld [vmem:[%s0 + $0xe8] sm:$0xf]
  %v47 = vld [vmem:[%s0 + $0xf0] sm:$0xf]
  %v48 = vld [vmem:[%s0 + $0xf8] sm:$0xf]
  %vm49 = vcmask 228352
  %v51 = vsel %vm49, %v15, 0
  %v54 = vsel %vm49, %v16, 0
  %vm56 = vcmask 1043456
  %v58 = vsel %vm56, %v41, 0
  %v61 = vsel %vm56, %v42, 0
  %v64 = vsel %vm56, %v43, 0
  %v67 = vsel %vm56, %v44, 0
  %v70 = vsel %vm56, %v45, 0
  %v73 = vsel %vm56, %v46, 0
  %v76 = vsel %vm56, %v47, 0
  %v79 = vsel %vm56, %v48, 0
  %81 = vmatprep.subr.mxu0 0.0
  %82 = vmatpush1.msra.mxu0 0.0
  %83 = vmatprep.subr.mxu0 0.0
  %84 = vmatpush1.msra.mxu0 0.0
  %85 = vmatprep.subr.mxu0 0.0
  %86 = vmatpush1.msra.mxu0 0.0
  %87 = vmatprep.subr.mxu0 0.0
  %88 = vmatpush1.msra.mxu0 0.0
  %89 = vmatprep.subr.mxu0 0.0
  %90 = vmatpush1.msra.mxu0 0.0
  %91 = vmatprep.subr.mxu0 0.0
  %92 = vmatpush1.msra.mxu0 0.0
  %93 = vmatprep.subr.mxu0 0.0
  %94 = vmatpush1.msra.mxu0 0.0
  %95 = vmatprep.subr.mxu0 0.0
  %96 = vmatpush1.msra.mxu0 0.0
  %97 = vmatprep.subr.mxu0 0.0
  %98 = vmatpush1.msra.mxu0 0.0
  %99 = vmatprep.subr.mxu0 0.0
  %100 = vmatpush1.msra.mxu0 0.0
  %101 = vmatprep.subr.mxu0 0.0
  %102 = vmatpush1.msra.mxu0 0.0
  %103 = vmatprep.subr.mxu0 0.0
  %104 = vmatpush1.msra.mxu0 0.0
  %105 = vmatprep.subr.mxu0 %v61
  %106 = vmatpush1.msra.mxu0 %v58
  %107 = vmatprep.subr.mxu0 %v34
  %108 = vmatpush1.msra.mxu0 %v33
  %109 = vmatprep.subr.mxu0 %v26
  %110 = vmatpush1.msra.mxu0 %v25
  %111 = vmatprep.subr.mxu0 %v18
  %112 = vmatpush1.msra.mxu0 %v17
  %113 = vmatprep.subr.mxu0 0.0
  %114 = vmatpush2.msra.mxu0 0.0
  %115 = vmatprep.subr.mxu0 0.0
  %116 = vmatpush2.msra.mxu0 0.0
  %117 = vmatprep.subr.mxu0 0.0
  %118 = vmatpush2.msra.mxu0 0.0
  %119 = vmatprep.subr.mxu0 0.0
  %120 = vmatpush2.msra.mxu0 0.0
  %121 = vmatprep.subr.mxu0 0.0
  %122 = vmatpush2.msra.mxu0 0.0
  %123 = vmatprep.subr.mxu0 0.0
  %124 = vmatpush2.msra.mxu0 0.0
  %125 = vmatprep.subr.mxu0 0.0
  %126 = vmatpush2.msra.mxu0 0.0
  %127 = vmatprep.subr.mxu0 0.0
  %128 = vmatpush2.msra.mxu0 0.0
  %129 = vmatprep.subr.mxu0 0.0
  %130 = vmatpush2.msra.mxu0 0.0
  %131 = vmatprep.subr.mxu0 0.0
  %132 = vmatpush2.msra.mxu0 0.0
  %133 = vmatprep.subr.mxu0 0.0
  %134 = vmatpush2.msra.mxu0 0.0
  %135 = vmatprep.subr.mxu0 0.0
  %136 = vmatpush2.msra.mxu0 0.0
  %137 = vmatprep.subr.mxu0 0.0
  %138 = vmatpush2.msra.mxu0 0.0
  %139 = vmatprep.subr.mxu0 0.0
  %140 = vmatpush2.msra.mxu0 0.0
  %141 = vmatprep.subr.mxu0 0.0
  %142 = vmatpush2.msra.mxu0 0.0
  %143 = vmatprep.subr.mxu0 0.0
  %144 = vmatpush2.msra.mxu0 0.0
  %145 = vmatprep.mubr.f32.mxu0 0.0
  %146 = vmatmul.mubr.f32.gmra.mxu0 %v51
  %v147 = vpop.f32.mrf.mxu0
  %v148 = vadd.f32 0.0, %v147
  %v149 = vpop.f32.mrf.mxu0
  %v150 = vadd.f32 0.0, %v149
  %151 = vmatprep.mubr.f32.mxu0 0.0
  %152 = vmatmul.mubr.f32.gmra.mxu0 %v54
  %v153 = vpop.f32.mrf.mxu0
  %v154 = vadd.f32 0.0, %v153
  %v155 = vpop.f32.mrf.mxu0
  %v156 = vadd.f32 0.0, %v155
  %157 = vdwg.mxu0
  %158 = vmatprep.subr.mxu0 0.0
  %159 = vmatpush1.msra.mxu0 0.0
  %160 = vmatprep.subr.mxu0 0.0
  %161 = vmatpush1.msra.mxu0 0.0
  %162 = vmatprep.subr.mxu0 0.0
  %163 = vmatpush1.msra.mxu0 0.0
  %164 = vmatprep.subr.mxu0 0.0
  %165 = vmatpush1.msra.mxu0 0.0
  %166 = vmatprep.subr.mxu0 0.0
  %167 = vmatpush1.msra.mxu0 0.0
  %168 = vmatprep.subr.mxu0 0.0
  %169 = vmatpush1.msra.mxu0 0.0
  %170 = vmatprep.subr.mxu0 0.0
  %171 = vmatpush1.msra.mxu0 0.0
  %172 = vmatprep.subr.mxu0 0.0
  %173 = vmatpush1.msra.mxu0 0.0
  %174 = vmatprep.subr.mxu0 0.0
  %175 = vmatpush1.msra.mxu0 0.0
  %176 = vmatprep.subr.mxu0 0.0
  %177 = vmatpush1.msra.mxu0 0.0
  %178 = vmatprep.subr.mxu0 0.0
  %179 = vmatpush1.msra.mxu0 0.0
  %180 = vmatprep.subr.mxu0 0.0
  %181 = vmatpush1.msra.mxu0 0.0
  %182 = vmatprep.subr.mxu0 %v67
  %183 = vmatpush1.msra.mxu0 %v64
  %184 = vmatprep.subr.mxu0 %v36
  %185 = vmatpush1.msra.mxu0 %v35
  %186 = vmatprep.subr.mxu0 %v28
  %187 = vmatpush1.msra.mxu0 %v27
  %188 = vmatprep.subr.mxu0 %v20
  %189 = vmatpush1.msra.mxu0 %v19
  %190 = vmatprep.subr.mxu0 0.0
  %191 = vmatpush2.msra.mxu0 0.0
  %192 = vmatprep.subr.mxu0 0.0
  %193 = vmatpush2.msra.mxu0 0.0
  %194 = vmatprep.subr.mxu0 0.0
  %195 = vmatpush2.msra.mxu0 0.0
  %196 = vmatprep.subr.mxu0 0.0
  %197 = vmatpush2.msra.mxu0 0.0
  %198 = vmatprep.subr.mxu0 0.0
  %199 = vmatpush2.msra.mxu0 0.0
  %200 = vmatprep.subr.mxu0 0.0
  %201 = vmatpush2.msra.mxu0 0.0
  %202 = vmatprep.subr.mxu0 0.0
  %203 = vmatpush2.msra.mxu0 0.0
  %204 = vmatprep.subr.mxu0 0.0
  %205 = vmatpush2.msra.mxu0 0.0
  %206 = vmatprep.subr.mxu0 0.0
  %207 = vmatpush2.msra.mxu0 0.0
  %208 = vmatprep.subr.mxu0 0.0
  %209 = vmatpush2.msra.mxu0 0.0
  %210 = vmatprep.subr.mxu0 0.0
  %211 = vmatpush2.msra.mxu0 0.0
  %212 = vmatprep.subr.mxu0 0.0
  %213 = vmatpush2.msra.mxu0 0.0
  %214 = vmatprep.subr.mxu0 0.0
  %215 = vmatpush2.msra.mxu0 0.0
  %216 = vmatprep.subr.mxu0 0.0
  %217 = vmatpush2.msra.mxu0 0.0
  %218 = vmatprep.subr.mxu0 0.0
  %219 = vmatpush2.msra.mxu0 0.0
  %220 = vmatprep.subr.mxu0 0.0
  %221 = vmatpush2.msra.mxu0 0.0
  %222 = vmatprep.mubr.f32.mxu0 0.0
  %223 = vmatmul.mubr.f32.gmra.mxu0 %v51
  %v224 = vpop.f32.mrf.mxu0
  %v225 = vadd.f32 0.0, %v224
  %v226 = vpop.f32.mrf.mxu0
  %v227 = vadd.f32 0.0, %v226
  %228 = vmatprep.mubr.f32.mxu0 0.0
  %229 = vmatmul.mubr.f32.gmra.mxu0 %v54
  %v230 = vpop.f32.mrf.mxu0
  %v231 = vadd.f32 0.0, %v230
  %v232 = vpop.f32.mrf.mxu0
  %v233 = vadd.f32 0.0, %v232
  %234 = vdwg.mxu0
  %235 = vmatprep.subr.mxu0 0.0
  %236 = vmatpush1.msra.mxu0 0.0
  %237 = vmatprep.subr.mxu0 0.0
  %238 = vmatpush1.msra.mxu0 0.0
  %239 = vmatprep.subr.mxu0 0.0
  %240 = vmatpush1.msra.mxu0 0.0
  %241 = vmatprep.subr.mxu0 0.0
  %242 = vmatpush1.msra.mxu0 0.0
  %243 = vmatprep.subr.mxu0 0.0
  %244 = vmatpush1.msra.mxu0 0.0
  %245 = vmatprep.subr.mxu0 0.0
  %246 = vmatpush1.msra.mxu0 0.0
  %247 = vmatprep.subr.mxu0 0.0
  %248 = vmatpush1.msra.mxu0 0.0
  %249 = vmatprep.subr.mxu0 0.0
  %250 = vmatpush1.msra.mxu0 0.0
  %251 = vmatprep.subr.mxu0 0.0
  %252 = vmatpush1.msra.mxu0 0.0
  %253 = vmatprep.subr.mxu0 0.0
  %254 = vmatpush1.msra.mxu0 0.0
  %255 = vmatprep.subr.mxu0 0.0
  %256 = vmatpush1.msra.mxu0 0.0
  %257 = vmatprep.subr.mxu0 0.0
  %258 = vmatpush1.msra.mxu0 0.0
  %259 = vmatprep.subr.mxu0 %v73
  %260 = vmatpush1.msra.mxu0 %v70
  %261 = vmatprep.subr.mxu0 %v38
  %262 = vmatpush1.msra.mxu0 %v37
  %263 = vmatprep.subr.mxu0 %v30
  %264 = vmatpush1.msra.mxu0 %v29
  %265 = vmatprep.subr.mxu0 %v22
  %266 = vmatpush1.msra.mxu0 %v21
  %267 = vmatprep.subr.mxu0 0.0
  %268 = vmatpush2.msra.mxu0 0.0
  %269 = vmatprep.subr.mxu0 0.0
  %270 = vmatpush2.msra.mxu0 0.0
  %271 = vmatprep.subr.mxu0 0.0
  %272 = vmatpush2.msra.mxu0 0.0
  %273 = vmatprep.subr.mxu0 0.0
  %274 = vmatpush2.msra.mxu0 0.0
  %275 = vmatprep.subr.mxu0 0.0
  %276 = vmatpush2.msra.mxu0 0.0
  %277 = vmatprep.subr.mxu0 0.0
  %278 = vmatpush2.msra.mxu0 0.0
  %279 = vmatprep.subr.mxu0 0.0
  %280 = vmatpush2.msra.mxu0 0.0
  %281 = vmatprep.subr.mxu0 0.0
  %282 = vmatpush2.msra.mxu0 0.0
  %283 = vmatprep.subr.mxu0 0.0
  %284 = vmatpush2.msra.mxu0 0.0
  %285 = vmatprep.subr.mxu0 0.0
  %286 = vmatpush2.msra.mxu0 0.0
  %287 = vmatprep.subr.mxu0 0.0
  %288 = vmatpush2.msra.mxu0 0.0
  %289 = vmatprep.subr.mxu0 0.0
  %290 = vmatpush2.msra.mxu0 0.0
  %291 = vmatprep.subr.mxu0 0.0
  %292 = vmatpush2.msra.mxu0 0.0
  %293 = vmatprep.subr.mxu0 0.0
  %294 = vmatpush2.msra.mxu0 0.0
  %295 = vmatprep.subr.mxu0 0.0
  %296 = vmatpush2.msra.mxu0 0.0
  %297 = vmatprep.subr.mxu0 0.0
  %298 = vmatpush2.msra.mxu0 0.0
  %299 = vmatprep.mubr.f32.mxu0 0.0
  %300 = vmatmul.mubr.f32.gmra.mxu0 %v51
  %v301 = vpop.f32.mrf.mxu0
  %v302 = vadd.f32 0.0, %v301
  %v303 = vpop.f32.mrf.mxu0
  %v304 = vadd.f32 0.0, %v303
  %305 = vmatprep.mubr.f32.mxu0 0.0
  %306 = vmatmul.mubr.f32.gmra.mxu0 %v54
  %v307 = vpop.f32.mrf.mxu0
  %v308 = vadd.f32 0.0, %v307
  %v309 = vpop.f32.mrf.mxu0
  %v310 = vadd.f32 0.0, %v309
  %311 = vdwg.mxu0
  %312 = vmatprep.subr.mxu0 0.0
  %313 = vmatpush1.msra.mxu0 0.0
  %314 = vmatprep.subr.mxu0 0.0
  %315 = vmatpush1.msra.mxu0 0.0
  %316 = vmatprep.subr.mxu0 0.0
  %317 = vmatpush1.msra.mxu0 0.0
  %318 = vmatprep.subr.mxu0 0.0
  %319 = vmatpush1.msra.mxu0 0.0
  %320 = vmatprep.subr.mxu0 0.0
  %321 = vmatpush1.msra.mxu0 0.0
  %322 = vmatprep.subr.mxu0 0.0
  %323 = vmatpush1.msra.mxu0 0.0
  %324 = vmatprep.subr.mxu0 0.0
  %325 = vmatpush1.msra.mxu0 0.0
  %326 = vmatprep.subr.mxu0 0.0
  %327 = vmatpush1.msra.mxu0 0.0
  %328 = vmatprep.subr.mxu0 0.0
  %329 = vmatpush1.msra.mxu0 0.0
  %330 = vmatprep.subr.mxu0 0.0
  %331 = vmatpush1.msra.mxu0 0.0
  %332 = vmatprep.subr.mxu0 0.0
  %333 = vmatpush1.msra.mxu0 0.0
  %334 = vmatprep.subr.mxu0 0.0
  %335 = vmatpush1.msra.mxu0 0.0
  %336 = vmatprep.subr.mxu0 %v79
  %337 = vmatpush1.msra.mxu0 %v76
  %338 = vmatprep.subr.mxu0 %v40
  %339 = vmatpush1.msra.mxu0 %v39
  %340 = vmatprep.subr.mxu0 %v32
  %341 = vmatpush1.msra.mxu0 %v31
  %342 = vmatprep.subr.mxu0 %v24
  %343 = vmatpush1.msra.mxu0 %v23
  %344 = vmatprep.subr.mxu0 0.0
  %345 = vmatpush2.msra.mxu0 0.0
  %346 = vmatprep.subr.mxu0 0.0
  %347 = vmatpush2.msra.mxu0 0.0
  %348 = vmatprep.subr.mxu0 0.0
  %349 = vmatpush2.msra.mxu0 0.0
  %350 = vmatprep.subr.mxu0 0.0
  %351 = vmatpush2.msra.mxu0 0.0
  %352 = vmatprep.subr.mxu0 0.0
  %353 = vmatpush2.msra.mxu0 0.0
  %354 = vmatprep.subr.mxu0 0.0
  %355 = vmatpush2.msra.mxu0 0.0
  %356 = vmatprep.subr.mxu0 0.0
  %357 = vmatpush2.msra.mxu0 0.0
  %358 = vmatprep.subr.mxu0 0.0
  %359 = vmatpush2.msra.mxu0 0.0
  %360 = vmatprep.subr.mxu0 0.0
  %361 = vmatpush2.msra.mxu0 0.0
  %362 = vmatprep.subr.mxu0 0.0
  %363 = vmatpush2.msra.mxu0 0.0
  %364 = vmatprep.subr.mxu0 0.0
  %365 = vmatpush2.msra.mxu0 0.0
  %366 = vmatprep.subr.mxu0 0.0
  %367 = vmatpush2.msra.mxu0 0.0
  %368 = vmatprep.subr.mxu0 0.0
  %369 = vmatpush2.msra.mxu0 0.0
  %370 = vmatprep.subr.mxu0 0.0
  %371 = vmatpush2.msra.mxu0 0.0
  %372 = vmatprep.subr.mxu0 0.0
  %373 = vmatpush2.msra.mxu0 0.0
  %374 = vmatprep.subr.mxu0 0.0
  %375 = vmatpush2.msra.mxu0 0.0
  %376 = vmatprep.mubr.f32.mxu0 0.0
  %377 = vmatmul.mubr.f32.gmra.mxu0 %v51
  %v378 = vpop.f32.mrf.mxu0
  %v379 = vadd.f32 0.0, %v378
  %v380 = vpop.f32.mrf.mxu0
  %v381 = vadd.f32 0.0, %v380
  %382 = vmatprep.mubr.f32.mxu0 0.0
  %383 = vmatmul.mubr.f32.gmra.mxu0 %v54
  %v384 = vpop.f32.mrf.mxu0
  %v385 = vadd.f32 0.0, %v384
  %v386 = vpop.f32.mrf.mxu0
  %v387 = vadd.f32 0.0, %v386
  %388 = vdwg.mxu0
  %v389 = vsub.f32 0.0, %v148
  %v390 = vsub.f32 0.0, %v150
  %v391 = vsub.f32 0.0, %v225
  %v392 = vsub.f32 0.0, %v227
  %v393 = vsub.f32 0.0, %v302
  %v394 = vsub.f32 0.0, %v304
  %v395 = vsub.f32 0.0, %v379
  %v396 = vsub.f32 0.0, %v381
  %v397 = vsub.f32 0.0, %v154
  %v398 = vsub.f32 0.0, %v156
  %v399 = vsub.f32 0.0, %v231
  %v400 = vsub.f32 0.0, %v233
  %v401 = vsub.f32 0.0, %v308
  %v402 = vsub.f32 0.0, %v310
  %v403 = vsub.f32 0.0, %v385
  %v404 = vsub.f32 0.0, %v387
  %v405 = vmul.f32 %v389, 1.442695
  %v406 = vpow.pop %v405
  %v407 = vmul.f32 %v390, 1.442695
  %v408 = vpow.pop %v407
  %v409 = vmul.f32 %v391, 1.442695
  %v410 = vpow.pop %v409
  %v411 = vmul.f32 %v392, 1.442695
  %v412 = vpow.pop %v411
  %v413 = vmul.f32 %v393, 1.442695
  %v414 = vpow.pop %v413
  %v415 = vmul.f32 %v394, 1.442695
  %v416 = vpow.pop %v415
  %v417 = vmul.f32 %v395, 1.442695
  %v418 = vpow.pop %v417
  %v419 = vmul.f32 %v396, 1.442695
  %v420 = vpow.pop %v419
  %v421 = vmul.f32 %v397, 1.442695
  %v422 = vpow.pop %v421
  %v423 = vmul.f32 %v398, 1.442695
  %v424 = vpow.pop %v423
  %v425 = vmul.f32 %v399, 1.442695
  %v426 = vpow.pop %v425
  %v427 = vmul.f32 %v400, 1.442695
  %v428 = vpow.pop %v427
  %v429 = vmul.f32 %v401, 1.442695
  %v430 = vpow.pop %v429
  %v431 = vmul.f32 %v402, 1.442695
  %v432 = vpow.pop %v431
  %v433 = vmul.f32 %v403, 1.442695
  %v434 = vpow.pop %v433
  %v435 = vmul.f32 %v404, 1.442695
  %v436 = vpow.pop %v435
  %v437 = vadd.f32 %v406, 1.0
  %v438 = vadd.f32 %v408, 1.0
  %v439 = vadd.f32 %v410, 1.0
  %v440 = vadd.f32 %v412, 1.0
  %v441 = vadd.f32 %v414, 1.0
  %v442 = vadd.f32 %v416, 1.0
  %v443 = vadd.f32 %v418, 1.0
  %v444 = vadd.f32 %v420, 1.0
  %v445 = vadd.f32 %v422, 1.0
  %v446 = vadd.f32 %v424, 1.0
  %v447 = vadd.f32 %v426, 1.0
  %v448 = vadd.f32 %v428, 1.0
  %v449 = vadd.f32 %v430, 1.0
  %v450 = vadd.f32 %v432, 1.0
  %v451 = vadd.f32 %v434, 1.0
  %v452 = vadd.f32 %v436, 1.0
  %v453 = vrcp.pop %v437
  %v454 = vrcp.pop %v438
  %v455 = vrcp.pop %v439
  %v456 = vrcp.pop %v440
  %v457 = vrcp.pop %v441
  %v458 = vrcp.pop %v442
  %v459 = vrcp.pop %v443
  %v460 = vrcp.pop %v444
  %v461 = vrcp.pop %v445
  %v462 = vrcp.pop %v446
  %v463 = vrcp.pop %v447
  %v464 = vrcp.pop %v448
  %v465 = vrcp.pop %v449
  %v466 = vrcp.pop %v450
  %v467 = vrcp.pop %v451
  %v468 = vrcp.pop %v452
  %v469 = vpack.c.bf16 %v461, %v453
  %v470 = vpack.c.bf16 %v462, %v454
  %v471 = vpack.c.bf16 %v463, %v455
  %v472 = vpack.c.bf16 %v464, %v456
  %v473 = vpack.c.bf16 %v465, %v457
  %v474 = vpack.c.bf16 %v466, %v458
  %v475 = vpack.c.bf16 %v467, %v459
  %v476 = vpack.c.bf16 %v468, %v460
  %v477 = vld [vmem:[%s2] sm:$0xf]
  %v478 = vld [vmem:[%s2 + $0x4] sm:$0xf]
  %v479 = vld [vmem:[%s2 + $0x8] sm:$0xf]
  %v480 = vld [vmem:[%s2 + $0xc] sm:$0xf]
  %v481 = vld [vmem:[%s2 + $0x10] sm:$0xf]
  %v482 = vld [vmem:[%s2 + $0x14] sm:$0xf]
  %v483 = vld [vmem:[%s2 + $0x18] sm:$0xf]
  %v484 = vld [vmem:[%s2 + $0x1c] sm:$0xf]
  %v485 = vld [vmem:[%s2 + $0x20] sm:$0xf]
  %v486 = vld [vmem:[%s2 + $0x24] sm:$0xf]
  %v487 = vld [vmem:[%s2 + $0x28] sm:$0xf]
  %v488 = vld [vmem:[%s2 + $0x2c] sm:$0xf]
  %v489 = vld [vmem:[%s2 + $0x30] sm:$0xf]
  %v490 = vld [vmem:[%s2 + $0x34] sm:$0xf]
  %v491 = vld [vmem:[%s2 + $0x38] sm:$0xf]
  %v492 = vld [vmem:[%s2 + $0x3c] sm:$0xf]
  %v493 = vld [vmem:[%s2 + $0x40] sm:$0xf]
  %v494 = vld [vmem:[%s2 + $0x44] sm:$0xf]
  %v495 = vld [vmem:[%s2 + $0x48] sm:$0xf]
  %v496 = vld [vmem:[%s2 + $0x4c] sm:$0xf]
  %v497 = vld [vmem:[%s2 + $0x50] sm:$0xf]
  %v498 = vld [vmem:[%s2 + $0x54] sm:$0xf]
  %v499 = vld [vmem:[%s2 + $0x58] sm:$0xf]
  %v500 = vld [vmem:[%s2 + $0x5c] sm:$0xf]
  %v501 = vld [vmem:[%s2 + $0x60] sm:$0xf]
  %v502 = vld [vmem:[%s2 + $0x64] sm:$0xf]
  %v503 = vld [vmem:[%s2 + $0x68] sm:$0xf]
  %v504 = vld [vmem:[%s2 + $0x6c] sm:$0xf]
  %v505 = vld [vmem:[%s2 + $0x70] sm:$0xf]
  %v506 = vld [vmem:[%s2 + $0x74] sm:$0xf]
  %v507 = vld [vmem:[%s2 + $0x78] sm:$0xf]
  %v508 = vld [vmem:[%s2 + $0x7c] sm:$0xf]
  %v509 = vld [vmem:[%s2 + $0x80] sm:$0xf]
  %v510 = vld [vmem:[%s2 + $0x84] sm:$0xf]
  %v511 = vld [vmem:[%s2 + $0x88] sm:$0xf]
  %v512 = vld [vmem:[%s2 + $0x8c] sm:$0xf]
  %v513 = vld [vmem:[%s2 + $0x90] sm:$0xf]
  %v514 = vld [vmem:[%s2 + $0x94] sm:$0xf]
  %v515 = vld [vmem:[%s2 + $0x98] sm:$0xf]
  %v516 = vld [vmem:[%s2 + $0x9c] sm:$0xf]
  %v517 = vld [vmem:[%s2 + $0xa0] sm:$0xf]
  %v518 = vld [vmem:[%s2 + $0xa4] sm:$0xf]
  %v519 = vld [vmem:[%s2 + $0xa8] sm:$0xf]
  %v520 = vld [vmem:[%s2 + $0xac] sm:$0xf]
  %v521 = vld [vmem:[%s2 + $0xb0] sm:$0xf]
  %v522 = vld [vmem:[%s2 + $0xb4] sm:$0xf]
  %v523 = vld [vmem:[%s2 + $0xb8] sm:$0xf]
  %v524 = vld [vmem:[%s2 + $0xbc] sm:$0xf]
  %v525 = vld [vmem:[%s2 + $0xc0] sm:$0xf]
  %v526 = vld [vmem:[%s2 + $0xc4] sm:$0xf]
  %v527 = vld [vmem:[%s2 + $0xc8] sm:$0xf]
  %v528 = vld [vmem:[%s2 + $0xcc] sm:$0xf]
  %v529 = vld [vmem:[%s2 + $0xd0] sm:$0xf]
  %v530 = vld [vmem:[%s2 + $0xd4] sm:$0xf]
  %v531 = vld [vmem:[%s2 + $0xd8] sm:$0xf]
  %v532 = vld [vmem:[%s2 + $0xdc] sm:$0xf]
  %v533 = vld [vmem:[%s2 + $0xe0] sm:$0xf]
  %v534 = vld [vmem:[%s2 + $0xe4] sm:$0xf]
  %v535 = vld [vmem:[%s2 + $0xe8] sm:$0xf]
  %v536 = vld [vmem:[%s2 + $0xec] sm:$0xf]
  %v537 = vld [vmem:[%s2 + $0xf0] sm:$0xf]
  %v538 = vld [vmem:[%s2 + $0xf4] sm:$0xf]
  %v539 = vld [vmem:[%s2 + $0xf8] sm:$0xf]
  %v540 = vld [vmem:[%s2 + $0xfc] sm:$0xf]
  %v541 = vld [vmem:[%s2 + $0x100] sm:$0xf]
  %v542 = vld [vmem:[%s2 + $0x104] sm:$0xf]
  %v543 = vld [vmem:[%s2 + $0x108] sm:$0xf]
  %v544 = vld [vmem:[%s2 + $0x10c] sm:$0xf]
  %v545 = vld [vmem:[%s2 + $0x110] sm:$0xf]
  %v546 = vld [vmem:[%s2 + $0x114] sm:$0xf]
  %v547 = vld [vmem:[%s2 + $0x118] sm:$0xf]
  %v548 = vld [vmem:[%s2 + $0x11c] sm:$0xf]
  %v549 = vld [vmem:[%s2 + $0x120] sm:$0xf]
  %v550 = vld [vmem:[%s2 + $0x124] sm:$0xf]
  %v551 = vld [vmem:[%s2 + $0x128] sm:$0xf]
  %v552 = vld [vmem:[%s2 + $0x12c] sm:$0xf]
  %v553 = vld [vmem:[%s2 + $0x130] sm:$0xf]
  %v554 = vld [vmem:[%s2 + $0x134] sm:$0xf]
  %v555 = vld [vmem:[%s2 + $0x138] sm:$0xf]
  %v556 = vld [vmem:[%s2 + $0x13c] sm:$0xf]
  %v557 = vld [vmem:[%s2 + $0x140] sm:$0xf]
  %v558 = vld [vmem:[%s2 + $0x144] sm:$0xf]
  %v559 = vld [vmem:[%s2 + $0x148] sm:$0xf]
  %v560 = vld [vmem:[%s2 + $0x14c] sm:$0xf]
  %v561 = vld [vmem:[%s2 + $0x150] sm:$0xf]
  %v562 = vld [vmem:[%s2 + $0x154] sm:$0xf]
  %v563 = vld [vmem:[%s2 + $0x158] sm:$0xf]
  %v564 = vld [vmem:[%s2 + $0x15c] sm:$0xf]
  %v565 = vld [vmem:[%s2 + $0x160] sm:$0xf]
  %v566 = vld [vmem:[%s2 + $0x164] sm:$0xf]
  %v567 = vld [vmem:[%s2 + $0x168] sm:$0xf]
  %v568 = vld [vmem:[%s2 + $0x16c] sm:$0xf]
  %v569 = vld [vmem:[%s2 + $0x170] sm:$0xf]
  %v570 = vld [vmem:[%s2 + $0x174] sm:$0xf]
  %v571 = vld [vmem:[%s2 + $0x178] sm:$0xf]
  %v572 = vld [vmem:[%s2 + $0x17c] sm:$0xf]
  %v573 = vld [vmem:[%s2 + $0x180] sm:$0xf]
  %v574 = vld [vmem:[%s2 + $0x184] sm:$0xf]
  %v575 = vld [vmem:[%s2 + $0x188] sm:$0xf]
  %v576 = vld [vmem:[%s2 + $0x18c] sm:$0xf]
  %v577 = vld [vmem:[%s2 + $0x190] sm:$0xf]
  %v578 = vld [vmem:[%s2 + $0x194] sm:$0xf]
  %v579 = vld [vmem:[%s2 + $0x198] sm:$0xf]
  %v580 = vld [vmem:[%s2 + $0x19c] sm:$0xf]
  %v581 = vld [vmem:[%s2 + $0x1a0] sm:$0xf]
  %v582 = vld [vmem:[%s2 + $0x1a4] sm:$0xf]
  %v583 = vld [vmem:[%s2 + $0x1a8] sm:$0xf]
  %v584 = vld [vmem:[%s2 + $0x1ac] sm:$0xf]
  %v585 = vld [vmem:[%s2 + $0x1b0] sm:$0xf]
  %v586 = vld [vmem:[%s2 + $0x1b4] sm:$0xf]
  %v587 = vld [vmem:[%s2 + $0x1b8] sm:$0xf]
  %v588 = vld [vmem:[%s2 + $0x1bc] sm:$0xf]
  %v589 = vld [vmem:[%s2 + $0x1c0] sm:$0xf]
  %v590 = vld [vmem:[%s2 + $0x1c4] sm:$0xf]
  %v591 = vld [vmem:[%s2 + $0x1c8] sm:$0xf]
  %v592 = vld [vmem:[%s2 + $0x1cc] sm:$0xf]
  %v593 = vld [vmem:[%s2 + $0x1d0] sm:$0xf]
  %v594 = vld [vmem:[%s2 + $0x1d4] sm:$0xf]
  %v595 = vld [vmem:[%s2 + $0x1d8] sm:$0xf]
  %v596 = vld [vmem:[%s2 + $0x1dc] sm:$0xf]
  %v597 = vld [vmem:[%s2 + $0x1e0] sm:$0xf]
  %v598 = vld [vmem:[%s2 + $0x1e4] sm:$0xf]
  %v599 = vld [vmem:[%s2 + $0x1e8] sm:$0xf]
  %v600 = vld [vmem:[%s2 + $0x1ec] sm:$0xf]
  %v601 = vld [vmem:[%s2 + $0x1f0] sm:$0xf]
  %v602 = vld [vmem:[%s2 + $0x1f4] sm:$0xf]
  %v603 = vld [vmem:[%s2 + $0x1f8] sm:$0xf]
  %v604 = vld [vmem:[%s2 + $0x1fc] sm:$0xf]
  %v733 = vunpack.c.l.b16 %v477
  %v734 = vunpack.c.l.b16 %v478
  %v735 = vunpack.c.l.b16 %v479
  %v736 = vunpack.c.l.b16 %v480
  %v737 = vunpack.c.l.b16 %v481
  %v738 = vunpack.c.l.b16 %v482
  %v739 = vunpack.c.l.b16 %v483
  %v740 = vunpack.c.l.b16 %v484
  %v741 = vunpack.c.l.b16 %v485
  %v742 = vunpack.c.l.b16 %v486
  %v743 = vunpack.c.l.b16 %v487
  %v744 = vunpack.c.l.b16 %v488
  %v745 = vunpack.c.l.b16 %v489
  %v746 = vunpack.c.l.b16 %v490
  %v747 = vunpack.c.l.b16 %v491
  %v748 = vunpack.c.l.b16 %v492
  %v749 = vunpack.c.l.b16 %v493
  %v750 = vunpack.c.l.b16 %v494
  %v751 = vunpack.c.l.b16 %v495
  %v752 = vunpack.c.l.b16 %v496
  %v753 = vunpack.c.l.b16 %v497
  %v754 = vunpack.c.l.b16 %v498
  %v755 = vunpack.c.l.b16 %v499
  %v756 = vunpack.c.l.b16 %v500
  %v757 = vunpack.c.l.b16 %v501
  %v758 = vunpack.c.l.b16 %v502
  %v759 = vunpack.c.l.b16 %v503
  %v760 = vunpack.c.l.b16 %v504
  %v761 = vunpack.c.l.b16 %v505
  %v762 = vunpack.c.l.b16 %v506
  %v763 = vunpack.c.l.b16 %v507
  %v764 = vunpack.c.l.b16 %v508
  %v765 = vunpack.c.l.b16 %v509
  %v766 = vunpack.c.l.b16 %v510
  %v767 = vunpack.c.l.b16 %v511
  %v768 = vunpack.c.l.b16 %v512
  %v769 = vunpack.c.l.b16 %v513
  %v770 = vunpack.c.l.b16 %v514
  %v771 = vunpack.c.l.b16 %v515
  %v772 = vunpack.c.l.b16 %v516
  %v773 = vunpack.c.l.b16 %v517
  %v774 = vunpack.c.l.b16 %v518
  %v775 = vunpack.c.l.b16 %v519
  %v776 = vunpack.c.l.b16 %v520
  %v777 = vunpack.c.l.b16 %v521
  %v778 = vunpack.c.l.b16 %v522
  %v779 = vunpack.c.l.b16 %v523
  %v780 = vunpack.c.l.b16 %v524
  %v781 = vunpack.c.l.b16 %v525
  %v782 = vunpack.c.l.b16 %v526
  %v783 = vunpack.c.l.b16 %v527
  %v784 = vunpack.c.l.b16 %v528
  %v785 = vunpack.c.l.b16 %v529
  %v786 = vunpack.c.l.b16 %v530
  %v787 = vunpack.c.l.b16 %v531
  %v788 = vunpack.c.l.b16 %v532
  %v789 = vunpack.c.l.b16 %v533
  %v790 = vunpack.c.l.b16 %v534
  %v791 = vunpack.c.l.b16 %v535
  %v792 = vunpack.c.l.b16 %v536
  %v793 = vunpack.c.l.b16 %v537
  %v794 = vunpack.c.l.b16 %v538
  %v795 = vunpack.c.l.b16 %v539
  %v796 = vunpack.c.l.b16 %v540
  %v797 = vunpack.c.l.b16 %v541
  %v798 = vunpack.c.l.b16 %v542
  %v799 = vunpack.c.l.b16 %v543
  %v800 = vunpack.c.l.b16 %v544
  %v801 = vunpack.c.l.b16 %v545
  %v802 = vunpack.c.l.b16 %v546
  %v803 = vunpack.c.l.b16 %v547
  %v804 = vunpack.c.l.b16 %v548
  %v805 = vunpack.c.l.b16 %v549
  %v806 = vunpack.c.l.b16 %v550
  %v807 = vunpack.c.l.b16 %v551
  %v808 = vunpack.c.l.b16 %v552
  %v809 = vunpack.c.l.b16 %v553
  %v810 = vunpack.c.l.b16 %v554
  %v811 = vunpack.c.l.b16 %v555
  %v812 = vunpack.c.l.b16 %v556
  %v813 = vunpack.c.l.b16 %v557
  %v814 = vunpack.c.l.b16 %v558
  %v815 = vunpack.c.l.b16 %v559
  %v816 = vunpack.c.l.b16 %v560
  %v817 = vunpack.c.l.b16 %v561
  %v818 = vunpack.c.l.b16 %v562
  %v819 = vunpack.c.l.b16 %v563
  %v820 = vunpack.c.l.b16 %v564
  %v821 = vunpack.c.l.b16 %v565
  %v822 = vunpack.c.l.b16 %v566
  %v823 = vunpack.c.l.b16 %v567
  %v824 = vunpack.c.l.b16 %v568
  %v825 = vunpack.c.l.b16 %v569
  %v826 = vunpack.c.l.b16 %v570
  %v827 = vunpack.c.l.b16 %v571
  %v828 = vunpack.c.l.b16 %v572
  %v829 = vunpack.c.l.b16 %v573
  %v830 = vunpack.c.l.b16 %v574
  %v831 = vunpack.c.l.b16 %v575
  %v832 = vunpack.c.l.b16 %v576
  %v833 = vunpack.c.l.b16 %v577
  %v834 = vunpack.c.l.b16 %v578
  %v835 = vunpack.c.l.b16 %v579
  %v836 = vunpack.c.l.b16 %v580
  %v837 = vunpack.c.l.b16 %v581
  %v838 = vunpack.c.l.b16 %v582
  %v839 = vunpack.c.l.b16 %v583
  %v840 = vunpack.c.l.b16 %v584
  %v841 = vunpack.c.l.b16 %v585
  %v842 = vunpack.c.l.b16 %v586
  %v843 = vunpack.c.l.b16 %v587
  %v844 = vunpack.c.l.b16 %v588
  %v845 = vunpack.c.l.b16 %v589
  %v846 = vunpack.c.l.b16 %v590
  %v847 = vunpack.c.l.b16 %v591
  %v848 = vunpack.c.l.b16 %v592
  %v849 = vunpack.c.l.b16 %v593
  %v850 = vunpack.c.l.b16 %v594
  %v851 = vunpack.c.l.b16 %v595
  %v852 = vunpack.c.l.b16 %v596
  %v853 = vunpack.c.l.b16 %v597
  %v854 = vunpack.c.l.b16 %v598
  %v855 = vunpack.c.l.b16 %v599
  %v856 = vunpack.c.l.b16 %v600
  %v857 = vunpack.c.l.b16 %v601
  %v858 = vunpack.c.l.b16 %v602
  %v859 = vunpack.c.l.b16 %v603
  %v860 = vunpack.c.l.b16 %v604
  %v861 = vpack.c.b16 %v734, %v733
  %v862 = vpack.c.b16 %v736, %v735
  %v863 = vpack.c.b16 %v738, %v737
  %v864 = vpack.c.b16 %v740, %v739
  %v865 = vpack.c.b16 %v742, %v741
  %v866 = vpack.c.b16 %v744, %v743
  %v867 = vpack.c.b16 %v746, %v745
  %v868 = vpack.c.b16 %v748, %v747
  %v869 = vpack.c.b16 %v750, %v749
  %v870 = vpack.c.b16 %v752, %v751
  %v871 = vpack.c.b16 %v754, %v753
  %v872 = vpack.c.b16 %v756, %v755
  %v873 = vpack.c.b16 %v758, %v757
  %v874 = vpack.c.b16 %v760, %v759
  %v875 = vpack.c.b16 %v762, %v761
  %v876 = vpack.c.b16 %v764, %v763
  %v877 = vpack.c.b16 %v766, %v765
  %v878 = vpack.c.b16 %v768, %v767
  %v879 = vpack.c.b16 %v770, %v769
  %v880 = vpack.c.b16 %v772, %v771
  %v881 = vpack.c.b16 %v774, %v773
  %v882 = vpack.c.b16 %v776, %v775
  %v883 = vpack.c.b16 %v778, %v777
  %v884 = vpack.c.b16 %v780, %v779
  %v885 = vpack.c.b16 %v782, %v781
  %v886 = vpack.c.b16 %v784, %v783
  %v887 = vpack.c.b16 %v786, %v785
  %v888 = vpack.c.b16 %v788, %v787
  %v889 = vpack.c.b16 %v790, %v789
  %v890 = vpack.c.b16 %v792, %v791
  %v891 = vpack.c.b16 %v794, %v793
  %v892 = vpack.c.b16 %v796, %v795
  %v893 = vpack.c.b16 %v798, %v797
  %v894 = vpack.c.b16 %v800, %v799
  %v895 = vpack.c.b16 %v802, %v801
  %v896 = vpack.c.b16 %v804, %v803
  %v897 = vpack.c.b16 %v806, %v805
  %v898 = vpack.c.b16 %v808, %v807
  %v899 = vpack.c.b16 %v810, %v809
  %v900 = vpack.c.b16 %v812, %v811
  %v901 = vpack.c.b16 %v814, %v813
  %v902 = vpack.c.b16 %v816, %v815
  %v903 = vpack.c.b16 %v818, %v817
  %v904 = vpack.c.b16 %v820, %v819
  %v905 = vpack.c.b16 %v822, %v821
  %v906 = vpack.c.b16 %v824, %v823
  %v907 = vpack.c.b16 %v826, %v825
  %v908 = vpack.c.b16 %v828, %v827
  %v909 = vpack.c.b16 %v830, %v829
  %v910 = vpack.c.b16 %v832, %v831
  %v911 = vpack.c.b16 %v834, %v833
  %v912 = vpack.c.b16 %v836, %v835
  %v913 = vpack.c.b16 %v838, %v837
  %v914 = vpack.c.b16 %v840, %v839
  %v915 = vpack.c.b16 %v842, %v841
  %v916 = vpack.c.b16 %v844, %v843
  %v917 = vpack.c.b16 %v846, %v845
  %v918 = vpack.c.b16 %v848, %v847
  %v919 = vpack.c.b16 %v850, %v849
  %v920 = vpack.c.b16 %v852, %v851
  %v921 = vpack.c.b16 %v854, %v853
  %v922 = vpack.c.b16 %v856, %v855
  %v923 = vpack.c.b16 %v858, %v857
  %v924 = vpack.c.b16 %v860, %v859
  %989 = vmatprep.subr.bf16.mxu0 0
  %990 = vmatpush1.bf16.msra.mxu0 %v868
  %991 = vmatprep.subr.bf16.mxu0 0
  %992 = vmatpush1.bf16.msra.mxu0 %v867
  %993 = vmatprep.subr.bf16.mxu0 0
  %994 = vmatpush1.bf16.msra.mxu0 %v866
  %995 = vmatprep.subr.bf16.mxu0 0
  %996 = vmatpush1.bf16.msra.mxu0 %v865
  %997 = vmatprep.subr.bf16.mxu0 0
  %998 = vmatpush1.bf16.msra.mxu0 %v864
  %999 = vmatprep.subr.bf16.mxu0 0
  %1000 = vmatpush1.bf16.msra.mxu0 %v863
  %1001 = vmatprep.subr.bf16.mxu0 0
  %1002 = vmatpush1.bf16.msra.mxu0 %v862
  %1003 = vmatprep.subr.bf16.mxu0 0
  %1004 = vmatpush1.bf16.msra.mxu0 %v861
  %1005 = vmatprep.subr.bf16.mxu0 0
  %1006 = vmatpush2.bf16.msra.mxu0 %v876
  %1007 = vmatprep.subr.bf16.mxu0 0
  %1008 = vmatpush2.bf16.msra.mxu0 %v875
  %1009 = vmatprep.subr.bf16.mxu0 0
  %1010 = vmatpush2.bf16.msra.mxu0 %v874
  %1011 = vmatprep.subr.bf16.mxu0 0
  %1012 = vmatpush2.bf16.msra.mxu0 %v873
  %1013 = vmatprep.subr.bf16.mxu0 0
  %1014 = vmatpush2.bf16.msra.mxu0 %v872
  %1015 = vmatprep.subr.bf16.mxu0 0
  %1016 = vmatpush2.bf16.msra.mxu0 %v871
  %1017 = vmatprep.subr.bf16.mxu0 0
  %1018 = vmatpush2.bf16.msra.mxu0 %v870
  %1019 = vmatprep.subr.bf16.mxu0 0
  %1020 = vmatpush2.bf16.msra.mxu0 %v869
  %1021 = vmatprep.mubr.bf16.mxu0 %v470
  %1022 = vmatmul.mubr.bf16.gmra.mxu0 %v469
  %v1023 = vpop.f32.mrf.mxu0
  %v1024 = vadd.f32 0.0, %v1023
  %v1025 = vpop.f32.mrf.mxu0
  %v1026 = vpop.f32.mrf.mxu0
  %v1027 = vadd.f32 0.0, %v1026
  %v1028 = vpop.f32.mrf.mxu0
  %1029 = vdwg.mxu0
  %1030 = vmatprep.subr.bf16.mxu0 0
  %1031 = vmatpush1.bf16.msra.mxu0 %v884
  %1032 = vmatprep.subr.bf16.mxu0 0
  %1033 = vmatpush1.bf16.msra.mxu0 %v883
  %1034 = vmatprep.subr.bf16.mxu0 0
  %1035 = vmatpush1.bf16.msra.mxu0 %v882
  %1036 = vmatprep.subr.bf16.mxu0 0
  %1037 = vmatpush1.bf16.msra.mxu0 %v881
  %1038 = vmatprep.subr.bf16.mxu0 0
  %1039 = vmatpush1.bf16.msra.mxu0 %v880
  %1040 = vmatprep.subr.bf16.mxu0 0
  %1041 = vmatpush1.bf16.msra.mxu0 %v879
  %1042 = vmatprep.subr.bf16.mxu0 0
  %1043 = vmatpush1.bf16.msra.mxu0 %v878
  %1044 = vmatprep.subr.bf16.mxu0 0
  %1045 = vmatpush1.bf16.msra.mxu0 %v877
  %1046 = vmatprep.subr.bf16.mxu0 0
  %1047 = vmatpush2.bf16.msra.mxu0 %v892
  %1048 = vmatprep.subr.bf16.mxu0 0
  %1049 = vmatpush2.bf16.msra.mxu0 %v891
  %1050 = vmatprep.subr.bf16.mxu0 0
  %1051 = vmatpush2.bf16.msra.mxu0 %v890
  %1052 = vmatprep.subr.bf16.mxu0 0
  %1053 = vmatpush2.bf16.msra.mxu0 %v889
  %1054 = vmatprep.subr.bf16.mxu0 0
  %1055 = vmatpush2.bf16.msra.mxu0 %v888
  %1056 = vmatprep.subr.bf16.mxu0 0
  %1057 = vmatpush2.bf16.msra.mxu0 %v887
  %1058 = vmatprep.subr.bf16.mxu0 0
  %1059 = vmatpush2.bf16.msra.mxu0 %v886
  %1060 = vmatprep.subr.bf16.mxu0 0
  %1061 = vmatpush2.bf16.msra.mxu0 %v885
  %1062 = vmatprep.mubr.bf16.mxu0 %v472
  %1063 = vmatmul.mubr.bf16.gmra.mxu0 %v471
  %v1064 = vpop.f32.mrf.mxu0
  %v1065 = vadd.f32 %v1024, %v1064
  %v1066 = vpop.f32.mrf.mxu0
  %v1067 = vpop.f32.mrf.mxu0
  %v1068 = vadd.f32 %v1027, %v1067
  %v1069 = vpop.f32.mrf.mxu0
  %1070 = vdwg.mxu0
  %1071 = vmatprep.subr.bf16.mxu0 0
  %1072 = vmatpush1.bf16.msra.mxu0 %v900
  %1073 = vmatprep.subr.bf16.mxu0 0
  %1074 = vmatpush1.bf16.msra.mxu0 %v899
  %1075 = vmatprep.subr.bf16.mxu0 0
  %1076 = vmatpush1.bf16.msra.mxu0 %v898
  %1077 = vmatprep.subr.bf16.mxu0 0
  %1078 = vmatpush1.bf16.msra.mxu0 %v897
  %1079 = vmatprep.subr.bf16.mxu0 0
  %1080 = vmatpush1.bf16.msra.mxu0 %v896
  %1081 = vmatprep.subr.bf16.mxu0 0
  %1082 = vmatpush1.bf16.msra.mxu0 %v895
  %1083 = vmatprep.subr.bf16.mxu0 0
  %1084 = vmatpush1.bf16.msra.mxu0 %v894
  %1085 = vmatprep.subr.bf16.mxu0 0
  %1086 = vmatpush1.bf16.msra.mxu0 %v893
  %1087 = vmatprep.subr.bf16.mxu0 0
  %1088 = vmatpush2.bf16.msra.mxu0 %v908
  %1089 = vmatprep.subr.bf16.mxu0 0
  %1090 = vmatpush2.bf16.msra.mxu0 %v907
  %1091 = vmatprep.subr.bf16.mxu0 0
  %1092 = vmatpush2.bf16.msra.mxu0 %v906
  %1093 = vmatprep.subr.bf16.mxu0 0
  %1094 = vmatpush2.bf16.msra.mxu0 %v905
  %1095 = vmatprep.subr.bf16.mxu0 0
  %1096 = vmatpush2.bf16.msra.mxu0 %v904
  %1097 = vmatprep.subr.bf16.mxu0 0
  %1098 = vmatpush2.bf16.msra.mxu0 %v903
  %1099 = vmatprep.subr.bf16.mxu0 0
  %1100 = vmatpush2.bf16.msra.mxu0 %v902
  %1101 = vmatprep.subr.bf16.mxu0 0
  %1102 = vmatpush2.bf16.msra.mxu0 %v901
  %1103 = vmatprep.mubr.bf16.mxu0 %v474
  %1104 = vmatmul.mubr.bf16.gmra.mxu0 %v473
  %v1105 = vpop.f32.mrf.mxu0
  %v1106 = vadd.f32 %v1065, %v1105
  %v1107 = vpop.f32.mrf.mxu0
  %v1108 = vpop.f32.mrf.mxu0
  %v1109 = vadd.f32 %v1068, %v1108
  %v1110 = vpop.f32.mrf.mxu0
  %1111 = vdwg.mxu0
  %1112 = vmatprep.subr.bf16.mxu0 0
  %1113 = vmatpush1.bf16.msra.mxu0 %v916
  %1114 = vmatprep.subr.bf16.mxu0 0
  %1115 = vmatpush1.bf16.msra.mxu0 %v915
  %1116 = vmatprep.subr.bf16.mxu0 0
  %1117 = vmatpush1.bf16.msra.mxu0 %v914
  %1118 = vmatprep.subr.bf16.mxu0 0
  %1119 = vmatpush1.bf16.msra.mxu0 %v913
  %1120 = vmatprep.subr.bf16.mxu0 0
  %1121 = vmatpush1.bf16.msra.mxu0 %v912
  %1122 = vmatprep.subr.bf16.mxu0 0
  %1123 = vmatpush1.bf16.msra.mxu0 %v911
  %1124 = vmatprep.subr.bf16.mxu0 0
  %1125 = vmatpush1.bf16.msra.mxu0 %v910
  %1126 = vmatprep.subr.bf16.mxu0 0
  %1127 = vmatpush1.bf16.msra.mxu0 %v909
  %1128 = vmatprep.subr.bf16.mxu0 0
  %1129 = vmatpush2.bf16.msra.mxu0 %v924
  %1130 = vmatprep.subr.bf16.mxu0 0
  %1131 = vmatpush2.bf16.msra.mxu0 %v923
  %1132 = vmatprep.subr.bf16.mxu0 0
  %1133 = vmatpush2.bf16.msra.mxu0 %v922
  %1134 = vmatprep.subr.bf16.mxu0 0
  %1135 = vmatpush2.bf16.msra.mxu0 %v921
  %1136 = vmatprep.subr.bf16.mxu0 0
  %1137 = vmatpush2.bf16.msra.mxu0 %v920
  %1138 = vmatprep.subr.bf16.mxu0 0
  %1139 = vmatpush2.bf16.msra.mxu0 %v919
  %1140 = vmatprep.subr.bf16.mxu0 0
  %1141 = vmatpush2.bf16.msra.mxu0 %v918
  %1142 = vmatprep.subr.bf16.mxu0 0
  %1143 = vmatpush2.bf16.msra.mxu0 %v917
  %1144 = vmatprep.mubr.bf16.mxu0 %v476
  %1145 = vmatmul.mubr.bf16.gmra.mxu0 %v475
  %v1146 = vpop.f32.mrf.mxu0
  %v1147 = vadd.f32 %v1106, %v1146
  %v1148 = vpop.f32.mrf.mxu0
  %v1149 = vpop.f32.mrf.mxu0
  %v1150 = vadd.f32 %v1109, %v1149
  %v1151 = vpop.f32.mrf.mxu0
  %1152 = vdwg.mxu0
  %1153 = vst [vmem:[%s3] sm:$0xff] %v1147
  %1154 = vst [vmem:[%s3 + $0x8] sm:$0xff] %v1150
  // Predicated region
  $region14: #{model_forward.1} parent=0 // pred_check
    _
  $region15: #{model_forward.1} parent=0 // pred_check_branch
    %1156 = sbr.rel (0) target = $region17
  $region16: #{model_forward.1} parent=0 // pred_region
    _
  $region17: #{model_forward.1} parent=0 // pred_fallthru
    _
  // Predicated region
  $region18: #{model_forward.1} parent=0 // pred_check
    _
  $region19: #{model_forward.1} parent=0 // pred_check_branch
    %1158 = sbr.rel (0) target = $region21
  $region20: #{model_forward.1} parent=0 // pred_region
    _
  $region21: #{model_forward.1} parent=0 // pred_fallthru
    _

</llo_original>
